<compile_context>
chip_gen: v5e
topology: v5e:2x2
jax: 0.10.0
libtpu: 0.0.40
codegen_flags: <defaults>
</compile_context>

<pallas_src>
import functools

import jax
import jax.numpy as jnp
from jax.experimental import pallas as pl
from jax.experimental.pallas import tpu as pltpu


def _round_up(x, m):
    return (x + m - 1) // m * m


# ----------------------------- Pallas kernel ------------------------------ #
def _conv3x3_bias_relu_kernel(x_ref, m_ref, b_ref, o_ref):
    # x_ref: (Rin, Kp)     bf16 zero-padded row-slab (all images of this block,
    #                      row = n_in_block*Hp + hp, lane = wp*C + c)
    # m_ref: (KH, Kp, Lp)  bf16 per-dh banded weight matrices (dw folded in)
    # b_ref: (1, Lp)       f32 bias row (lane = w*Cout + co)
    # o_ref: (Rout, Lp)    lane-dense output rows (row = n_in_block*Hp + h)
    rout = o_ref.shape[0]
    kh = m_ref.shape[0]
    acc = jnp.zeros(o_ref.shape, jnp.float32)          # f32 register accumulator
    for dh in range(kh):                                # 3 taps, statically unrolled
        xs = x_ref[dh:dh + rout, :]                     # static sublane-offset slice
        acc = acc + jnp.dot(xs, m_ref[dh], preferred_element_type=jnp.float32)
    acc = acc + b_ref[...]                              # f32 epilogue
    o_ref[...] = jnp.maximum(acc, 0.0).astype(o_ref.dtype)


# ----------------------- hoisted parameter preprocessing ------------------- #
def prepare_conv_params(weight, bias, H, W, *, compute_dtype=jnp.bfloat16):
    """Build the banded tap matrices (dw folded in) and the tiled bias row.

    Call once per weight update — NOT inside the per-forward path.
    """
    Cout, C, KH, KW = weight.shape
    Wp = W + KW - 1
    K, L = Wp * C, W * Cout
    Kp, Lp = _round_up(K, 128), _round_up(L, 128)

    # band[dw, wp, w] = 1 iff wp == w + dw   (the horizontal shift lives in the band)
    band = (jnp.arange(Wp)[None, :, None]
            == (jnp.arange(W)[None, None, :] + jnp.arange(KW)[:, None, None])
            ).astype(jnp.float32)                                   # (KW, Wp, W)
    w_taps = jnp.transpose(weight, (2, 3, 1, 0)).astype(jnp.float32)  # (KH, KW, C, Cout)
    # Fold the KW (dw) taps into a single banded matrix per dh: 9 -> 3 matmuls.
    # M[dh, wp*C + c, w*Cout + co] = weight[co, c, dh, wp - w]  (0 outside the band)
    m = jnp.einsum('vpw,uvco->upcwo', band, w_taps)                 # (KH, Wp, C, W, Cout)
    m = m.reshape(KH, K, L)
    m = jnp.pad(m, ((0, 0), (0, Kp - K), (0, Lp - L))).astype(compute_dtype)

    b_row = jnp.tile(bias.astype(jnp.float32), W).reshape(1, L)     # b_row[w*Cout+co]=b[co]
    if Lp != L:
        b_row = jnp.pad(b_row, ((0, 0), (0, Lp - L)))
    return m, b_row


# ------------------------------- forward wrapper ---------------------------- #
def conv3x3_relu_pallas(x_nchw, m, b_row, *, cout, kh=3, kw=3, images_per_block=None):
    """relu(conv2d(x, weight, bias, stride=1, padding=1)) in NCHW, using the
    precomputed (m, b_row) from prepare_conv_params."""
    N, C, H, W = x_nchw.shape
    out_dtype = x_nchw.dtype
    compute_dtype = m.dtype
    Hp, Wp = H + kh - 1, W + kw - 1
    K, L = Wp * C, W * cout
    KH, Kp, Lp = m.shape
    assert KH == kh and Kp >= K and Lp >= L

    # One fat block over the whole (tiny) batch by default; grid=(G,) otherwise.
    B = N if images_per_block is None else images_per_block
    assert N % B == 0
    G = N // B
    rows = B * Hp                              # valid rows per block (stride Hp per image)
    r_out = _round_up(rows, 8)                 # 8-aligned output rows per block
    r_in = _round_up(r_out + kh - 1, 8)        # input rows cover the dh=0..kh-1 slices

    # ---- layout glue (single pass; NCHW contract at the module boundary) ----
    x = jnp.transpose(x_nchw, (0, 2, 3, 1))                               # (N,H,W,C)
    x = jnp.pad(x, ((0, 0), (kh // 2,) * 2, (kw // 2,) * 2, (0, 0)))      # (N,Hp,Wp,C)
    x = x.reshape(G, rows, K)                                             # channel-minor rows
    x = jnp.pad(x, ((0, 0), (0, r_in - rows), (0, Kp - K)))               # 8/128-aligned slab
    x = x.astype(compute_dtype)                                           # bf16 MXU operand

    itemsize = jnp.dtype(compute_dtype).itemsize
    cost = pl.CostEstimate(
        flops=2 * G * kh * r_out * Kp * Lp,                # actual MXU work (3 taps)
        transcendentals=0,
        bytes_accessed=(x.size * itemsize + m.size * itemsize + b_row.size * 4
                        + G * r_out * Lp * jnp.dtype(out_dtype).itemsize),
    )

    out = pl.pallas_call(
        _conv3x3_bias_relu_kernel,
        out_shape=jax.ShapeDtypeStruct((G, r_out, Lp), out_dtype),
        grid_spec=pltpu.PrefetchScalarGridSpec(
            num_scalar_prefetch=0,
            grid=(G,),
            in_specs=[
                pl.BlockSpec((None, r_in, Kp), lambda g: (g, 0, 0)),   # activation slab
                pl.BlockSpec((kh, Kp, Lp), lambda g: (0, 0, 0)),       # tap matrices (VMEM-resident)
                pl.BlockSpec((1, Lp), lambda g: (0, 0)),               # bias row
            ],
            out_specs=pl.BlockSpec((None, r_out, Lp), lambda g: (g, 0, 0)),
        ),
        compiler_params=pltpu.CompilerParams(
            dimension_semantics=("arbitrary",) if G == 1 else ("parallel",),
            vmem_limit_bytes=32 * 1024 * 1024,
        ),
        cost_estimate=cost,
    )(x, m, b_row)

    # (G, r_out, Lp) -> (N, Cout, H, W); drop the per-image Hp>H rows and padded lanes.
    out = out[:, :rows, :L].reshape(G, B, Hp, W, cout)[:, :, :H]
    out = out.reshape(N, H, W, cout)
    return jnp.transpose(out, (0, 3, 1, 2))


# --------------------------------- main ------------------------------------ #
if __name__ == "__main__":
    key = jax.random.PRNGKey(0)
    k_x, k_w, k_b = jax.random.split(key, 3)

    N, C, H, W = 2, 4, 16, 16
    Cout = 8

    x = jax.random.normal(k_x, (N, C, H, W), dtype=jnp.float32)
    # deterministic parameter init (kaiming-uniform-ish scale)
    fan_in = C * 3 * 3
    bound = (1.0 / fan_in) ** 0.5
    weight = jax.random.uniform(k_w, (Cout, C, 3, 3), jnp.float32, -bound, bound)
    bias = jax.random.uniform(k_b, (Cout,), jnp.float32, -bound, bound)

    # Hoisted prep: once per weight update, not per forward.
    m, b_row = jax.block_until_ready(prepare_conv_params(weight, bias, H, W))

    fwd = jax.jit(functools.partial(conv3x3_relu_pallas, cout=Cout))
    y = jax.block_until_ready(fwd(x, m, b_row))

    # reference: same semantics as nn.Conv2d(pad=1) + bias + ReLU (f32)
    y_ref = jax.lax.conv_general_dilated(
        x, weight, window_strides=(1, 1), padding="SAME",
        dimension_numbers=("NCHW", "OIHW", "NCHW"),
    ) + bias.reshape(1, Cout, 1, 1)
    y_ref = jnp.maximum(y_ref, 0.0)

    assert y.shape == (N, Cout, H, W)
    # bf16 MXU operands with f32 accumulation: loosen tolerance vs the f32 reference.
    assert jnp.allclose(y, y_ref, atol=5e-2, rtol=5e-2), float(jnp.max(jnp.abs(y - y_ref)))

    print("KERNEL_OK")
</pallas_src>

<mosaic_0001>
module attributes {stable_mosaic.version = 11 : i64} {
  func.func @_conv3x3_bias_relu_kernel(%arg0: i32, %arg1: memref<1x48x128xbf16, #tpu.memory_space<vmem>>, %arg2: memref<3x128x128xbf16, #tpu.memory_space<vmem>>, %arg3: memref<1x128xf32, #tpu.memory_space<vmem>>, %arg4: memref<1x40x128xf32, #tpu.memory_space<vmem>>) attributes {dimension_semantics = [#tpu.dimension_semantics<arbitrary>], iteration_bounds = array<i64: 1>, scalar_prefetch = 0 : i64, scratch_operands = 0 : i64, tpu.core_type = #tpu.core_type<tc>, window_params = [{transform_indices = @transform_0, window_bounds = array<i64: 1, 48, 128>}, {pipeline_mode = #tpu.pipeline_mode<synchronous>, transform_indices = @transform_1, window_bounds = array<i64: 3, 128, 128>}, {pipeline_mode = #tpu.pipeline_mode<synchronous>, transform_indices = @transform_2, window_bounds = array<i64: 1, 128>}, {transform_indices = @transform_3, window_bounds = array<i64: 1, 40, 128>}]} {
    %cst = arith.constant 0.000000e+00 : f32
    %0 = vector.broadcast %cst : f32 to vector<40x128xf32>
    %c0 = arith.constant 0 : index
    %c0_0 = arith.constant 0 : index
    %c0_1 = arith.constant 0 : index
    %1 = vector.load %arg1[%c0, %c0_0, %c0_1] : memref<1x48x128xbf16, #tpu.memory_space<vmem>>, vector<1x40x128xbf16>
    %2 = vector.shape_cast %1 : vector<1x40x128xbf16> to vector<40x128xbf16>
    %c0_2 = arith.constant 0 : index
    %c0_3 = arith.constant 0 : index
    %c0_4 = arith.constant 0 : index
    %3 = vector.load %arg2[%c0_2, %c0_3, %c0_4] : memref<3x128x128xbf16, #tpu.memory_space<vmem>>, vector<1x128x128xbf16>
    %4 = vector.shape_cast %3 : vector<1x128x128xbf16> to vector<128x128xbf16>
    %cst_5 = arith.constant dense<0.000000e+00> : vector<40x128xf32>
    %5 = tpu.matmul %2, %4, %cst_5 {dimension_numbers = #tpu.dot_dimension_numbers<[1], [0], [0], [1], [0, 0, 1, 1], [], []>} : vector<40x128xbf16>, vector<128x128xbf16>, vector<40x128xf32> -> vector<40x128xf32>
    %6 = arith.addf %0, %5 : vector<40x128xf32>
    %c0_6 = arith.constant 0 : index
    %c1 = arith.constant 1 : index
    %c0_7 = arith.constant 0 : index
    %7 = vector.load %arg1[%c0_6, %c1, %c0_7] : memref<1x48x128xbf16, #tpu.memory_space<vmem>>, vector<1x40x128xbf16>
    %8 = vector.shape_cast %7 : vector<1x40x128xbf16> to vector<40x128xbf16>
    %c1_8 = arith.constant 1 : index
    %c0_9 = arith.constant 0 : index
    %c0_10 = arith.constant 0 : index
    %9 = vector.load %arg2[%c1_8, %c0_9, %c0_10] : memref<3x128x128xbf16, #tpu.memory_space<vmem>>, vector<1x128x128xbf16>
    %10 = vector.shape_cast %9 : vector<1x128x128xbf16> to vector<128x128xbf16>
    %cst_11 = arith.constant dense<0.000000e+00> : vector<40x128xf32>
    %11 = tpu.matmul %8, %10, %cst_11 {dimension_numbers = #tpu.dot_dimension_numbers<[1], [0], [0], [1], [0, 0, 1, 1], [], []>} : vector<40x128xbf16>, vector<128x128xbf16>, vector<40x128xf32> -> vector<40x128xf32>
    %12 = arith.addf %6, %11 : vector<40x128xf32>
    %c0_12 = arith.constant 0 : index
    %c2 = arith.constant 2 : index
    %c0_13 = arith.constant 0 : index
    %13 = vector.load %arg1[%c0_12, %c2, %c0_13] : memref<1x48x128xbf16, #tpu.memory_space<vmem>>, vector<1x40x128xbf16>
    %14 = vector.shape_cast %13 : vector<1x40x128xbf16> to vector<40x128xbf16>
    %c2_14 = arith.constant 2 : index
    %c0_15 = arith.constant 0 : index
    %c0_16 = arith.constant 0 : index
    %15 = vector.load %arg2[%c2_14, %c0_15, %c0_16] : memref<3x128x128xbf16, #tpu.memory_space<vmem>>, vector<1x128x128xbf16>
    %16 = vector.shape_cast %15 : vector<1x128x128xbf16> to vector<128x128xbf16>
    %cst_17 = arith.constant dense<0.000000e+00> : vector<40x128xf32>
    %17 = tpu.matmul %14, %16, %cst_17 {dimension_numbers = #tpu.dot_dimension_numbers<[1], [0], [0], [1], [0, 0, 1, 1], [], []>} : vector<40x128xbf16>, vector<128x128xbf16>, vector<40x128xf32> -> vector<40x128xf32>
    %18 = arith.addf %12, %17 : vector<40x128xf32>
    %c0_18 = arith.constant 0 : index
    %c0_19 = arith.constant 0 : index
    %19 = vector.load %arg3[%c0_18, %c0_19] : memref<1x128xf32, #tpu.memory_space<vmem>>, vector<1x128xf32>
    %20 = vector.broadcast %19 : vector<1x128xf32> to vector<40x128xf32>
    %21 = arith.addf %18, %20 : vector<40x128xf32>
    %cst_20 = arith.constant 0.000000e+00 : f32
    %22 = vector.broadcast %cst_20 : f32 to vector<40x128xf32>
    %23 = arith.maximumf %21, %22 : vector<40x128xf32>
    %c0_21 = arith.constant 0 : index
    %c0_22 = arith.constant 0 : index
    %c0_23 = arith.constant 0 : index
    %24 = vector.load %arg4[%c0_21, %c0_22, %c0_23] : memref<1x40x128xf32, #tpu.memory_space<vmem>>, vector<1x40x128xf32>
    %25 = vector.shape_cast %24 : vector<1x40x128xf32> to vector<40x128xf32>
    %26 = vector.shape_cast %23 : vector<40x128xf32> to vector<1x40x128xf32>
    tpu.vector_store %arg4[%c0_21, %c0_22, %c0_23], %26 {strides = array<i32>} : memref<1x40x128xf32, #tpu.memory_space<vmem>>, vector<1x40x128xf32>,
    return
  }
  func.func @transform_0(%arg0: i32) -> (i32, i32, i32) {
    %c0_i32 = arith.constant 0 : i32
    %c0_i32_0 = arith.constant 0 : i32
    %c0_i32_1 = arith.constant 0 : i32
    return %arg0, %c0_i32, %c0_i32_0 : i32, i32, i32
  }
  func.func @transform_1(%arg0: i32) -> (i32, i32, i32) {
    %c0_i32 = arith.constant 0 : i32
    %c0_i32_0 = arith.constant 0 : i32
    %c0_i32_1 = arith.constant 0 : i32
    %c0_i32_2 = arith.constant 0 : i32
    return %c0_i32, %c0_i32_0, %c0_i32_1 : i32, i32, i32
  }
  func.func @transform_2(%arg0: i32) -> (i32, i32) {
    %c0_i32 = arith.constant 0 : i32
    %c0_i32_0 = arith.constant 0 : i32
    %c0_i32_1 = arith.constant 0 : i32
    return %c0_i32, %c0_i32_0 : i32, i32
  }
  func.func @transform_3(%arg0: i32) -> (i32, i32, i32) {
    %c0_i32 = arith.constant 0 : i32
    %c0_i32_0 = arith.constant 0 : i32
    %c0_i32_1 = arith.constant 0 : i32
    return %arg0, %c0_i32, %c0_i32_0 : i32, i32, i32
  }
}

</mosaic_0001>

<llo_original>
// kernel: conv3x3_relu_pallas.1
$region0: #{conv3x3_relu_pallas.1}
  #allocation0 [shape = 'u32[]', space=smem, size = 0x4, offset = 0x4, fixed_abs, tag = 'smem constant byte address 0x4 - core index']
  #allocation1 [shape = 'u32[72,128]{1,0:T(1,128)}', space=vmem, size = 0x9000, scoped, tag = 'internal scratch']
  %s0 = inlined_call_operand.vmem [shape: bf16[1,48,128], index: 0, kind: input, shape index: {}]
  %s1 = inlined_call_operand.vmem [shape: bf16[3,128,128], index: 1, kind: input, shape index: {}]
  %s2 = inlined_call_operand.vmem [shape: f32[1,128], index: 2, kind: input, shape index: {}]
  %s3 = inlined_call_operand.vmem [shape: f32[1,40,128], index: 3, kind: output, shape index: {}]
  %s4 = sld [smem:[#allocation0]]
  $region22: #{conv3x3_relu_pallas.1} parent=0
    _
  %s6 = ssub.s32 1, %s4
  %s7 = scalar_select 0, %s6, %s4
  // Predicated region
  $region2: #{conv3x3_relu_pallas.1} parent=0 // pred_check
    _
  $region3: #{conv3x3_relu_pallas.1} parent=0 // pred_check_branch
    %9 = sbr.rel (0) target = $region5
  $region4: #{conv3x3_relu_pallas.1} parent=0 // pred_region
    _
  $region5: #{conv3x3_relu_pallas.1} parent=0 // pred_fallthru
    _
  // Predicated region
  $region6: #{conv3x3_relu_pallas.1} parent=0 // pred_check
    _
  $region7: #{conv3x3_relu_pallas.1} parent=0 // pred_check_branch
    %11 = sbr.rel (0) target = $region9
  $region8: #{conv3x3_relu_pallas.1} parent=0 // pred_region
    _
  $region9: #{conv3x3_relu_pallas.1} parent=0 // pred_fallthru
    _
  // Predicated region
  $region10: #{conv3x3_relu_pallas.1} parent=0 // pred_check
    _
  $region11: #{conv3x3_relu_pallas.1} parent=0 // pred_check_branch
    %13 = sbr.rel (0) target = $region13
  $region12: #{conv3x3_relu_pallas.1} parent=0 // pred_region
    _
  $region13: #{conv3x3_relu_pallas.1} parent=0 // pred_fallthru
    _
  %v14 = vld [vmem:[%s0] sm:$0xf]
  %v15 = vld [vmem:[%s0 + $0x4] sm:$0xf]
  %v16 = vld [vmem:[%s0 + $0x8] sm:$0xf]
  %v17 = vld [vmem:[%s0 + $0xc] sm:$0xf]
  %v18 = vld [vmem:[%s0 + $0x10] sm:$0xf]
  %v19 = vld [vmem:[%s1] sm:$0xf]
  %v20 = vld [vmem:[%s1 + $0x4] sm:$0xf]
  %v21 = vld [vmem:[%s1 + $0x8] sm:$0xf]
  %v22 = vld [vmem:[%s1 + $0xc] sm:$0xf]
  %v23 = vld [vmem:[%s1 + $0x10] sm:$0xf]
  %v24 = vld [vmem:[%s1 + $0x14] sm:$0xf]
  %v25 = vld [vmem:[%s1 + $0x18] sm:$0xf]
  %v26 = vld [vmem:[%s1 + $0x1c] sm:$0xf]
  %v27 = vld [vmem:[%s1 + $0x20] sm:$0xf]
  %v28 = vld [vmem:[%s1 + $0x24] sm:$0xf]
  %v29 = vld [vmem:[%s1 + $0x28] sm:$0xf]
  %v30 = vld [vmem:[%s1 + $0x2c] sm:$0xf]
  %v31 = vld [vmem:[%s1 + $0x30] sm:$0xf]
  %v32 = vld [vmem:[%s1 + $0x34] sm:$0xf]
  %v33 = vld [vmem:[%s1 + $0x38] sm:$0xf]
  %v34 = vld [vmem:[%s1 + $0x3c] sm:$0xf]
  %v35 = vld [vmem:[%s0] sm:$0xf]
  %v36 = vld [vmem:[%s0 + $0x4] sm:$0xf]
  %v37 = vld [vmem:[%s0 + $0x8] sm:$0xf]
  %v38 = vld [vmem:[%s0 + $0xc] sm:$0xf]
  %v39 = vld [vmem:[%s0 + $0x10] sm:$0xf]
  %v40 = vld [vmem:[%s0 + $0x14] sm:$0x1]
  %s41 = scalar_lea.vmem %s1, 64
  %v42 = vld [vmem:[%s41] sm:$0xf]
  %v43 = vld [vmem:[%s41 + $0x4] sm:$0xf]
  %v44 = vld [vmem:[%s41 + $0x8] sm:$0xf]
  %v45 = vld [vmem:[%s41 + $0xc] sm:$0xf]
  %v46 = vld [vmem:[%s41 + $0x10] sm:$0xf]
  %v47 = vld [vmem:[%s41 + $0x14] sm:$0xf]
  %v48 = vld [vmem:[%s41 + $0x18] sm:$0xf]
  %v49 = vld [vmem:[%s41 + $0x1c] sm:$0xf]
  %v50 = vld [vmem:[%s41 + $0x20] sm:$0xf]
  %v51 = vld [vmem:[%s41 + $0x24] sm:$0xf]
  %v52 = vld [vmem:[%s41 + $0x28] sm:$0xf]
  %v53 = vld [vmem:[%s41 + $0x2c] sm:$0xf]
  %v54 = vld [vmem:[%s41 + $0x30] sm:$0xf]
  %v55 = vld [vmem:[%s41 + $0x34] sm:$0xf]
  %v56 = vld [vmem:[%s41 + $0x38] sm:$0xf]
  %v57 = vld [vmem:[%s41 + $0x3c] sm:$0xf]
  %v64 = vunpack.c.l.b16 %v35
  %v65 = vunpack.c.l.b16 %v36
  %v66 = vunpack.c.l.b16 %v37
  %v67 = vunpack.c.l.b16 %v38
  %v68 = vunpack.c.l.b16 %v39
  %v69 = vunpack.c.l.b16 %v40
  %v70 = vpack.c.b16 %v65, %v64
  %v71 = vpack.c.b16 %v67, %v66
  %v72 = vpack.c.b16 %v69, %v68
  %vm73 = vsmask.f32 7424
  %v75 = vshrl.u32 %v70, 16
  %v77 = vshll.u32 %v70, 16
  %v79 = vrot.slane %v77, 1
  %v80 = vor.u32 %v75, %v79
  %v82 = vshll.u32 %v71, 16
  %v84 = vrot.slane %v82, 1
  %v85 = vsel %vm73, %v80, %v84
  %v86 = vshrl.u32 %v71, 16
  %v88 = vor.u32 %v86, %v84
  %v90 = vshll.u32 %v72, 16
  %v92 = vrot.slane %v90, 1
  %v93 = vsel %vm73, %v88, %v92
  %v94 = vshrl.u32 %v72, 16
  %v96 = vor.u32 %v94, %v92
  %v116 = vunpack.c.l.b16 %v42
  %v117 = vunpack.c.l.b16 %v43
  %v118 = vunpack.c.l.b16 %v44
  %v119 = vunpack.c.l.b16 %v45
  %v120 = vunpack.c.l.b16 %v46
  %v121 = vunpack.c.l.b16 %v47
  %v122 = vunpack.c.l.b16 %v48
  %v123 = vunpack.c.l.b16 %v49
  %v124 = vunpack.c.l.b16 %v50
  %v125 = vunpack.c.l.b16 %v51
  %v126 = vunpack.c.l.b16 %v52
  %v127 = vunpack.c.l.b16 %v53
  %v128 = vunpack.c.l.b16 %v54
  %v129 = vunpack.c.l.b16 %v55
  %v130 = vunpack.c.l.b16 %v56
  %v131 = vunpack.c.l.b16 %v57
  %v132 = vpack.c.b16 %v117, %v116
  %v133 = vpack.c.b16 %v119, %v118
  %v134 = vpack.c.b16 %v121, %v120
  %v135 = vpack.c.b16 %v123, %v122
  %v136 = vpack.c.b16 %v125, %v124
  %v137 = vpack.c.b16 %v127, %v126
  %v138 = vpack.c.b16 %v129, %v128
  %v139 = vpack.c.b16 %v131, %v130
  %148 = vmatpush.bf16.msra.mxu0 %v139
  %149 = vmatpush.bf16.msra.mxu0 %v138
  %150 = vmatpush.bf16.msra.mxu0 %v137
  %151 = vmatpush.bf16.msra.mxu0 %v136
  %152 = vmatpush.bf16.msra.mxu0 %v135
  %153 = vmatpush.bf16.msra.mxu0 %v134
  %154 = vmatpush.bf16.msra.mxu0 %v133
  %155 = vmatpush.bf16.msra.mxu0 %v132
  %156 = vmatmul.bf16.gmra.mxu0 %v85
  %v157 = vpop.f32.mrf.mxu0
  %v158 = vadd.f32 0.0, %v157
  %v159 = vpop.f32.mrf.mxu0
  %v160 = vadd.f32 0.0, %v159
  %161 = vmatmul.bf16.gmra.mxu0 %v93
  %v162 = vpop.f32.mrf.mxu0
  %v163 = vadd.f32 0.0, %v162
  %v164 = vpop.f32.mrf.mxu0
  %v165 = vadd.f32 0.0, %v164
  %166 = vmatmul.bf16.gmra.mxu0 %v96
  %v167 = vpop.f32.mrf.mxu0
  %v168 = vadd.f32 0.0, %v167
  %v169 = vpop.f32.mrf.mxu0
  %170 = vdwg.mxu0
  %v176 = vunpack.c.l.b16 %v14
  %v177 = vunpack.c.l.b16 %v15
  %v178 = vunpack.c.l.b16 %v16
  %v179 = vunpack.c.l.b16 %v17
  %v180 = vunpack.c.l.b16 %v18
  %v181 = vpack.c.b16 %v177, %v176
  %v182 = vpack.c.b16 %v179, %v178
  %v183 = vpack.c.b16 %v180, %v180
  %v203 = vunpack.c.l.b16 %v19
  %v204 = vunpack.c.l.b16 %v20
  %v205 = vunpack.c.l.b16 %v21
  %v206 = vunpack.c.l.b16 %v22
  %v207 = vunpack.c.l.b16 %v23
  %v208 = vunpack.c.l.b16 %v24
  %v209 = vunpack.c.l.b16 %v25
  %v210 = vunpack.c.l.b16 %v26
  %v211 = vunpack.c.l.b16 %v27
  %v212 = vunpack.c.l.b16 %v28
  %v213 = vunpack.c.l.b16 %v29
  %v214 = vunpack.c.l.b16 %v30
  %v215 = vunpack.c.l.b16 %v31
  %v216 = vunpack.c.l.b16 %v32
  %v217 = vunpack.c.l.b16 %v33
  %v218 = vunpack.c.l.b16 %v34
  %v219 = vpack.c.b16 %v204, %v203
  %v220 = vpack.c.b16 %v206, %v205
  %v221 = vpack.c.b16 %v208, %v207
  %v222 = vpack.c.b16 %v210, %v209
  %v223 = vpack.c.b16 %v212, %v211
  %v224 = vpack.c.b16 %v214, %v213
  %v225 = vpack.c.b16 %v216, %v215
  %v226 = vpack.c.b16 %v218, %v217
  %235 = vmatpush.bf16.msra.mxu0 %v226
  %236 = vmatpush.bf16.msra.mxu0 %v225
  %237 = vmatpush.bf16.msra.mxu0 %v224
  %238 = vmatpush.bf16.msra.mxu0 %v223
  %239 = vmatpush.bf16.msra.mxu0 %v222
  %240 = vmatpush.bf16.msra.mxu0 %v221
  %241 = vmatpush.bf16.msra.mxu0 %v220
  %242 = vmatpush.bf16.msra.mxu0 %v219
  %243 = vmatmul.bf16.gmra.mxu0 %v181
  %v244 = vpop.f32.mrf.mxu0
  %v245 = vadd.f32 %v158, %v244
  %v246 = vpop.f32.mrf.mxu0
  %v247 = vadd.f32 %v160, %v246
  %248 = vmatmul.bf16.gmra.mxu0 %v182
  %v249 = vpop.f32.mrf.mxu0
  %v250 = vadd.f32 %v163, %v249
  %v251 = vpop.f32.mrf.mxu0
  %v252 = vadd.f32 %v165, %v251
  %253 = vmatmul.bf16.gmra.mxu0 %v183
  %v254 = vpop.f32.mrf.mxu0
  %v255 = vadd.f32 %v168, %v254
  %v256 = vpop.f32.mrf.mxu0
  %257 = vdwg.mxu0
  %v258 = vld [vmem:[%s0] sm:$0xe]
  %s259 = scalar_lea.vmem %s1, 128
  %v260 = vld [vmem:[%s259] sm:$0xf]
  %v261 = vld [vmem:[%s259 + $0x4] sm:$0xf]
  %v262 = vld [vmem:[%s259 + $0x8] sm:$0xf]
  %v263 = vld [vmem:[%s259 + $0xc] sm:$0xf]
  %v264 = vld [vmem:[%s259 + $0x10] sm:$0xf]
  %v265 = vld [vmem:[%s259 + $0x14] sm:$0xf]
  %v266 = vld [vmem:[%s259 + $0x18] sm:$0xf]
  %v267 = vld [vmem:[%s259 + $0x1c] sm:$0xf]
  %v268 = vld [vmem:[%s259 + $0x20] sm:$0xf]
  %v269 = vld [vmem:[%s259 + $0x24] sm:$0xf]
  %v270 = vld [vmem:[%s259 + $0x28] sm:$0xf]
  %v271 = vld [vmem:[%s259 + $0x2c] sm:$0xf]
  %v272 = vld [vmem:[%s259 + $0x30] sm:$0xf]
  %v273 = vld [vmem:[%s259 + $0x34] sm:$0xf]
  %v274 = vld [vmem:[%s259 + $0x38] sm:$0xf]
  %v275 = vld [vmem:[%s259 + $0x3c] sm:$0xf]
  %v277 = vunpack.c.l.b16 %v258
  %v278 = vpack.c.b16 %v65, %v277
  %vm279 = vcmask 1046528
  %v280 = vrot.slane %v278, 1
  %v281 = vrot.slane %v71, 1
  %v282 = vsel %vm279, %v280, %v281
  %v283 = vrot.slane %v72, 1
  %v284 = vsel %vm279, %v281, %v283
  %v304 = vunpack.c.l.b16 %v260
  %v305 = vunpack.c.l.b16 %v261
  %v306 = vunpack.c.l.b16 %v262
  %v307 = vunpack.c.l.b16 %v263
  %v308 = vunpack.c.l.b16 %v264
  %v309 = vunpack.c.l.b16 %v265
  %v310 = vunpack.c.l.b16 %v266
  %v311 = vunpack.c.l.b16 %v267
  %v312 = vunpack.c.l.b16 %v268
  %v313 = vunpack.c.l.b16 %v269
  %v314 = vunpack.c.l.b16 %v270
  %v315 = vunpack.c.l.b16 %v271
  %v316 = vunpack.c.l.b16 %v272
  %v317 = vunpack.c.l.b16 %v273
  %v318 = vunpack.c.l.b16 %v274
  %v319 = vunpack.c.l.b16 %v275
  %v320 = vpack.c.b16 %v305, %v304
  %v321 = vpack.c.b16 %v307, %v306
  %v322 = vpack.c.b16 %v309, %v308
  %v323 = vpack.c.b16 %v311, %v310
  %v324 = vpack.c.b16 %v313, %v312
  %v325 = vpack.c.b16 %v315, %v314
  %v326 = vpack.c.b16 %v317, %v316
  %v327 = vpack.c.b16 %v319, %v318
  %336 = vmatpush.bf16.msra.mxu0 %v327
  %337 = vmatpush.bf16.msra.mxu0 %v326
  %338 = vmatpush.bf16.msra.mxu0 %v325
  %339 = vmatpush.bf16.msra.mxu0 %v324
  %340 = vmatpush.bf16.msra.mxu0 %v323
  %341 = vmatpush.bf16.msra.mxu0 %v322
  %342 = vmatpush.bf16.msra.mxu0 %v321
  %343 = vmatpush.bf16.msra.mxu0 %v320
  %344 = vmatmul.bf16.gmra.mxu0 %v282
  %v345 = vpop.f32.mrf.mxu0
  %v346 = vadd.f32 0.0, %v345
  %v347 = vpop.f32.mrf.mxu0
  %v348 = vadd.f32 0.0, %v347
  %349 = vmatmul.bf16.gmra.mxu0 %v284
  %v350 = vpop.f32.mrf.mxu0
  %v351 = vadd.f32 0.0, %v350
  %v352 = vpop.f32.mrf.mxu0
  %v353 = vadd.f32 0.0, %v352
  %354 = vmatmul.bf16.gmra.mxu0 %v283
  %v355 = vpop.f32.mrf.mxu0
  %v356 = vadd.f32 0.0, %v355
  %v357 = vpop.f32.mrf.mxu0
  %358 = vdwg.mxu0
  %v359 = vadd.f32 %v245, %v346
  %v360 = vadd.f32 %v247, %v348
  %v361 = vadd.f32 %v250, %v351
  %v362 = vadd.f32 %v252, %v353
  %v363 = vadd.f32 %v255, %v356
  %v364 = vld [vmem:[%s2] sm:$0x1]
  %v366 = vperm.slane %v364, 0
  %v368 = vadd.f32 %v359, %v366
  %v369 = vadd.f32 %v360, %v366
  %v370 = vadd.f32 %v361, %v366
  %v371 = vadd.f32 %v362, %v366
  %v372 = vadd.f32 %v363, %v366
  %v373 = vmax.f32 %v368, 0.0
  %v374 = vmax.f32 %v369, 0.0
  %v375 = vmax.f32 %v370, 0.0
  %v376 = vmax.f32 %v371, 0.0
  %v377 = vmax.f32 %v372, 0.0
  %378 = vst [vmem:[%s3] sm:$0xff] %v373
  %379 = vst [vmem:[%s3 + $0x8] sm:$0xff] %v374
  %380 = vst [vmem:[%s3 + $0x10] sm:$0xff] %v375
  %381 = vst [vmem:[%s3 + $0x18] sm:$0xff] %v376
  %382 = vst [vmem:[%s3 + $0x20] sm:$0xff] %v377
  // Predicated region
  $region14: #{conv3x3_relu_pallas.1} parent=0 // pred_check
    _
  $region15: #{conv3x3_relu_pallas.1} parent=0 // pred_check_branch
    %384 = sbr.rel (0) target = $region17
  $region16: #{conv3x3_relu_pallas.1} parent=0 // pred_region
    _
  $region17: #{conv3x3_relu_pallas.1} parent=0 // pred_fallthru
    _
  // Predicated region
  $region18: #{conv3x3_relu_pallas.1} parent=0 // pred_check
    _
  $region19: #{conv3x3_relu_pallas.1} parent=0 // pred_check_branch
    %386 = sbr.rel (0) target = $region21
  $region20: #{conv3x3_relu_pallas.1} parent=0 // pred_region
    _
  $region21: #{conv3x3_relu_pallas.1} parent=0 // pred_fallthru
    _

</llo_original>
